<compile_context>
chip_gen: v5e
topology: v5e:2x2
jax: 0.10.0
libtpu: 0.0.40
codegen_flags: <defaults>
</compile_context>

<pallas_src>
import functools

import jax
import jax.numpy as jnp
from jax.experimental import pallas as pl
from jax.experimental.pallas import tpu as pltpu

GRID_RES = 8      # config['grid_resolution']
LATENT_DIM = 16   # config['feats_per_level_if_latent'] (stored_data == 'latent')


def _cc_kernel(pts_ref, grid_ref, out_ref, *, grid_res, latent_dim):
    R = grid_res
    C = latent_dim
    tn = pts_ref.shape[1]

    # ---- per-point discretization (coordinate-major: rows are x/y/z) ------
    ps = pts_ref[...].astype(jnp.float32) * (R - 2.0)       # [3, TN]
    l = jnp.floor(ps)
    wb = ps - l                                             # fractional (wb)
    wa = 1.0 - wb                                           # complement (wa)
    li = l.astype(jnp.int32)

    lx, ly, lz = li[0:1, :], li[1:2, :], li[2:3, :]         # [1, TN] rows
    wax, way, waz = wa[0:1, :], wa[1:2, :], wa[2:3, :]
    wbx, wby, wbz = wb[0:1, :], wb[1:2, :], wb[2:3, :]

    cx0 = jnp.clip(lx, 0, R - 1)
    cx1 = jnp.clip(lx + 1, 0, R - 1)
    cy0 = jnp.clip(ly, 0, R - 1)
    cy1 = jnp.clip(ly + 1, 0, R - 1)
    cz0 = jnp.clip(lz, 0, R - 1)
    cz1 = jnp.clip(lz + 1, 0, R - 1)

    # Tiny [R, 1] column iota; eq broadcasts over lanes (no [64, TN] iota).
    iota_r = jax.lax.broadcasted_iota(jnp.int32, (R, 1), 0)

    # Per-axis one-hot blends, [R, TN] each.  Clamped-corner collisions sum,
    # exactly matching the reference's summed gathers.
    wx8 = (jnp.where(iota_r == cx0, wax, 0.0)
           + jnp.where(iota_r == cx1, wbx, 0.0))            # [R, TN]
    wy8 = (jnp.where(iota_r == cy0, way, 0.0)
           + jnp.where(iota_r == cy1, wby, 0.0))            # [R, TN]
    wz8 = (jnp.where(iota_r == cz0, waz, 0.0)
           + jnp.where(iota_r == cz1, wbz, 0.0))            # [R, TN]

    # ---- factorized XY one-hot as an outer product -------------------------
    # wxy_t[x*R + y, n] = wx8[x, n] * wy8[y, n]  (single [R,R,TN] multiply).
    wxy_t = (wx8[:, None, :] * wy8[None, :, :]).reshape(R * R, tn)

    # ---- stage 1: XY contraction on the MXU --------------------------------
    # H^T[z*C + c, n] = sum_xy G[x, y, z, c] * Wxy[n, xy]
    h = jnp.dot(grid_ref[...], wxy_t,
                preferred_element_type=jnp.float32)          # [R*C, TN]

    # ---- stage 2: z blend on the VPU (8 slabs, vreg-aligned slices) -------
    acc = jnp.zeros((C, tn), jnp.float32)
    for z in range(R):
        acc = acc + h[z * C:(z + 1) * C, :] * wz8[z:z + 1, :]

    out_ref[...] = acc.astype(out_ref.dtype)                 # lane-dense store


def _ceil_to(x, m):
    return -(-x // m) * m


def _choose_tile(n, max_tile):
    """Lane-aligned tile; cap so the grid has >= 2 steps (v7x megacore)."""
    max_tile = max(128, _ceil_to(max_tile, 128))
    n128 = _ceil_to(max(n, 1), 128)
    if n128 < 256:
        return 128
    half = _ceil_to(n128 // 2, 128)
    return max(128, min(max_tile, half))


def prepare_latent_table(grid_flat, grid_res=GRID_RES):
    """Pre-transpose the latent table once: rows = z*C + c, cols = x*R + y."""
    R = grid_res
    n_cells, c = grid_flat.shape
    assert n_cells == R ** 3
    return (grid_flat.astype(jnp.float32)
            .reshape(R, R, R, c).transpose(2, 3, 0, 1).reshape(R * c, R * R))


def cc_encoding_forward_t(pts_t, grid_t, *, grid_res=GRID_RES, tile_n=1024,
                          vmem_limit_bytes=None):
    """Layout-native entry: pts_t [3, N] in [0,1], grid_t from
    prepare_latent_table -> out^T [C, N].  Avoids wrapper HBM transposes."""
    d, n = pts_t.shape
    assert d == 3
    rc, rr = grid_t.shape
    R = grid_res
    assert rr == R * R and rc % R == 0
    c = rc // R

    tile = _choose_tile(n, tile_n)
    n_pad = _ceil_to(n, tile)
    if n_pad != n:
        pts_t = jnp.pad(pts_t.astype(jnp.float32), ((0, 0), (0, n_pad - n)))
    else:
        pts_t = pts_t.astype(jnp.float32)

    # Rough per-step VMEM estimate: double-buffered pts/out, resident G^T,
    # live intermediates (h, wxy, wx/wy/wz, acc).  Only raise the scoped
    # limit when it actually matters (very large tiles).
    est = tile * 4 * (2 * 3 + 2 * c + R * c + R * R + 4 * R) + 2 * rc * rr * 4
    if vmem_limit_bytes is None and est > (12 << 20):
        vmem_limit_bytes = min(2 * est, 96 << 20)

    cp_kwargs = dict(dimension_semantics=("parallel",))
    if vmem_limit_bytes:
        cp_kwargs["vmem_limit_bytes"] = int(vmem_limit_bytes)

    kernel = functools.partial(_cc_kernel, grid_res=R, latent_dim=c)
    out_t = pl.pallas_call(
        kernel,
        out_shape=jax.ShapeDtypeStruct((c, n_pad), jnp.float32),
        grid_spec=pltpu.PrefetchScalarGridSpec(
            num_scalar_prefetch=0,
            grid=(n_pad // tile,),
            in_specs=[
                pl.BlockSpec((3, tile), lambda i: (0, i)),        # pts^T tile
                pl.BlockSpec((R * c, R * R), lambda i: (0, 0)),   # full G^T (resident)
            ],
            out_specs=pl.BlockSpec((c, tile), lambda i: (0, i)),  # out^T tile
        ),
        compiler_params=pltpu.CompilerParams(**cp_kwargs),
    )(pts_t, grid_t)
    return out_t[:, :n]


def cc_encoding_forward(pts, grid_flat, *, grid_res=GRID_RES, tile_n=1024):
    """Module-interface wrapper: pts [N, 3] in [0,1], grid_flat [R^3, C]
    -> [N, C].  NOTE: the in/out transposes cost an extra HBM pass each;
    production callers should use cc_encoding_forward_t + prepare_latent_table."""
    n, d = pts.shape
    assert d == 3
    g_t = prepare_latent_table(grid_flat, grid_res)
    out_t = cc_encoding_forward_t(pts.astype(jnp.float32).T, g_t,
                                  grid_res=grid_res, tile_n=tile_n)
    return out_t.T


def cc_encoding_ref(pts, grid_flat, grid_res):
    """Pure-JAX reference mirroring CCEncoding._interpolate_linear."""
    R = grid_res
    g = grid_flat.reshape(R, R, R, -1)
    ps = pts * (R - 2.0)
    l = jnp.floor(ps)
    wb = ps - l
    wa = 1.0 - wb
    li = l.astype(jnp.int32)

    def gather(dx, dy, dz):
        cx = jnp.clip(li[:, 0] + dx, 0, R - 1)
        cy = jnp.clip(li[:, 1] + dy, 0, R - 1)
        cz = jnp.clip(li[:, 2] + dz, 0, R - 1)
        return g[cx, cy, cz]

    out = jnp.zeros((pts.shape[0], grid_flat.shape[1]), jnp.float32)
    for dx in (0, 1):
        wx = wb[:, 0:1] if dx else wa[:, 0:1]
        for dy in (0, 1):
            wy = wb[:, 1:2] if dy else wa[:, 1:2]
            for dz in (0, 1):
                wz = wb[:, 2:3] if dz else wa[:, 2:3]
                out = out + gather(dx, dy, dz) * (wx * wy * wz)
    return out


if __name__ == "__main__":
    key = jax.random.PRNGKey(0)
    k_pts, k_grid = jax.random.split(key)

    # Deterministic synthetic latent table (nn.Embedding(R^3, latent_dim) stand-in).
    grid_flat = jax.random.normal(
        k_grid, (GRID_RES ** 3, LATENT_DIM), dtype=jnp.float32) * 0.01

    # Main check: N = 512 query points -> tile auto-capped to 256, 2 grid
    # steps (both v7x TensorCores get work).
    N = 512
    pts = jax.random.uniform(k_pts, (N, 3), dtype=jnp.float32)
    out = jax.block_until_ready(cc_encoding_forward(pts, grid_flat))
    ref = cc_encoding_ref(pts, grid_flat, GRID_RES)
    assert out.shape == (N, LATENT_DIM)
    assert jnp.allclose(out, ref, atol=1e-5, rtol=1e-5), float(
        jnp.max(jnp.abs(out - ref)))

    # Ragged-N check (exercises wrapper-side padding; tile=128, 2 steps).
    N2 = 193
    pts2 = jax.random.uniform(jax.random.PRNGKey(1), (N2, 3), dtype=jnp.float32)
    out2 = jax.block_until_ready(cc_encoding_forward(pts2, grid_flat))
    ref2 = cc_encoding_ref(pts2, grid_flat, GRID_RES)
    assert out2.shape == (N2, LATENT_DIM)
    assert jnp.allclose(out2, ref2, atol=1e-5, rtol=1e-5), float(
        jnp.max(jnp.abs(out2 - ref2)))

    # Larger-tile check via the layout-native entry (tile=1024, 3 steps),
    # exercising the path production callers should use.
    N3 = 3000
    pts3 = jax.random.uniform(jax.random.PRNGKey(2), (N3, 3), dtype=jnp.float32)
    g_t = prepare_latent_table(grid_flat, GRID_RES)
    out3_t = jax.block_until_ready(cc_encoding_forward_t(pts3.T, g_t))
    ref3 = cc_encoding_ref(pts3, grid_flat, GRID_RES)
    assert out3_t.shape == (LATENT_DIM, N3)
    assert jnp.allclose(out3_t.T, ref3, atol=1e-5, rtol=1e-5), float(
        jnp.max(jnp.abs(out3_t.T - ref3)))

    print("KERNEL_OK")
</pallas_src>

<mosaic_0001>
module attributes {stable_mosaic.version = 11 : i64} {
  func.func @_cc_kernel(%arg0: i32, %arg1: memref<3x256xf32, #tpu.memory_space<vmem>>, %arg2: memref<128x64xf32, #tpu.memory_space<vmem>>, %arg3: memref<16x256xf32, #tpu.memory_space<vmem>>) attributes {dimension_semantics = [#tpu.dimension_semantics<parallel>], iteration_bounds = array<i64: 2>, scalar_prefetch = 0 : i64, scratch_operands = 0 : i64, tpu.core_type = #tpu.core_type<tc>, window_params = [{transform_indices = @transform_0, window_bounds = array<i64: 3, 256>}, {pipeline_mode = #tpu.pipeline_mode<synchronous>, transform_indices = @transform_1, window_bounds = array<i64: 128, 64>}, {transform_indices = @transform_2, window_bounds = array<i64: 16, 256>}]} {
    %c0 = arith.constant 0 : index
    %c0_0 = arith.constant 0 : index
    %0 = vector.load %arg1[%c0, %c0_0] : memref<3x256xf32, #tpu.memory_space<vmem>>, vector<3x256xf32>
    %cst = arith.constant 6.000000e+00 : f32
    %1 = vector.broadcast %cst : f32 to vector<3x256xf32>
    %2 = arith.mulf %0, %1 : vector<3x256xf32>
    %3 = math.floor %2 : vector<3x256xf32>
    %4 = arith.subf %2, %3 : vector<3x256xf32>
    %cst_1 = arith.constant 1.000000e+00 : f32
    %5 = vector.broadcast %cst_1 : f32 to vector<3x256xf32>
    %6 = arith.subf %5, %4 : vector<3x256xf32>
    %7 = arith.fptosi %3 : vector<3x256xf32> to vector<3x256xi32>
    %8 = vector.extract_strided_slice %7 {offsets = [0, 0], sizes = [1, 256], strides = [1, 1]} : vector<3x256xi32> to vector<1x256xi32>
    %9 = vector.extract_strided_slice %7 {offsets = [1, 0], sizes = [1, 256], strides = [1, 1]} : vector<3x256xi32> to vector<1x256xi32>
    %10 = vector.extract_strided_slice %7 {offsets = [2, 0], sizes = [1, 256], strides = [1, 1]} : vector<3x256xi32> to vector<1x256xi32>
    %11 = vector.extract_strided_slice %6 {offsets = [0, 0], sizes = [1, 256], strides = [1, 1]} : vector<3x256xf32> to vector<1x256xf32>
    %12 = vector.extract_strided_slice %6 {offsets = [1, 0], sizes = [1, 256], strides = [1, 1]} : vector<3x256xf32> to vector<1x256xf32>
    %13 = vector.extract_strided_slice %6 {offsets = [2, 0], sizes = [1, 256], strides = [1, 1]} : vector<3x256xf32> to vector<1x256xf32>
    %14 = vector.extract_strided_slice %4 {offsets = [0, 0], sizes = [1, 256], strides = [1, 1]} : vector<3x256xf32> to vector<1x256xf32>
    %15 = vector.extract_strided_slice %4 {offsets = [1, 0], sizes = [1, 256], strides = [1, 1]} : vector<3x256xf32> to vector<1x256xf32>
    %16 = vector.extract_strided_slice %4 {offsets = [2, 0], sizes = [1, 256], strides = [1, 1]} : vector<3x256xf32> to vector<1x256xf32>
    %c0_i32 = arith.constant 0 : i32
    %c7_i32 = arith.constant 7 : i32
    %17 = vector.broadcast %c0_i32 : i32 to vector<1x256xi32>
    %18 = arith.maxsi %17, %8 : vector<1x256xi32>
    %19 = vector.broadcast %c7_i32 : i32 to vector<1x256xi32>
    %20 = arith.minsi %19, %18 : vector<1x256xi32>
    %c1_i32 = arith.constant 1 : i32
    %21 = vector.broadcast %c1_i32 : i32 to vector<1x256xi32>
    %22 = arith.addi %8, %21 : vector<1x256xi32>
    %c0_i32_2 = arith.constant 0 : i32
    %c7_i32_3 = arith.constant 7 : i32
    %23 = vector.broadcast %c0_i32_2 : i32 to vector<1x256xi32>
    %24 = arith.maxsi %23, %22 : vector<1x256xi32>
    %25 = vector.broadcast %c7_i32_3 : i32 to vector<1x256xi32>
    %26 = arith.minsi %25, %24 : vector<1x256xi32>
    %c0_i32_4 = arith.constant 0 : i32
    %c7_i32_5 = arith.constant 7 : i32
    %27 = vector.broadcast %c0_i32_4 : i32 to vector<1x256xi32>
    %28 = arith.maxsi %27, %9 : vector<1x256xi32>
    %29 = vector.broadcast %c7_i32_5 : i32 to vector<1x256xi32>
    %30 = arith.minsi %29, %28 : vector<1x256xi32>
    %c1_i32_6 = arith.constant 1 : i32
    %31 = vector.broadcast %c1_i32_6 : i32 to vector<1x256xi32>
    %32 = arith.addi %9, %31 : vector<1x256xi32>
    %c0_i32_7 = arith.constant 0 : i32
    %c7_i32_8 = arith.constant 7 : i32
    %33 = vector.broadcast %c0_i32_7 : i32 to vector<1x256xi32>
    %34 = arith.maxsi %33, %32 : vector<1x256xi32>
    %35 = vector.broadcast %c7_i32_8 : i32 to vector<1x256xi32>
    %36 = arith.minsi %35, %34 : vector<1x256xi32>
    %c0_i32_9 = arith.constant 0 : i32
    %c7_i32_10 = arith.constant 7 : i32
    %37 = vector.broadcast %c0_i32_9 : i32 to vector<1x256xi32>
    %38 = arith.maxsi %37, %10 : vector<1x256xi32>
    %39 = vector.broadcast %c7_i32_10 : i32 to vector<1x256xi32>
    %40 = arith.minsi %39, %38 : vector<1x256xi32>
    %c1_i32_11 = arith.constant 1 : i32
    %41 = vector.broadcast %c1_i32_11 : i32 to vector<1x256xi32>
    %42 = arith.addi %10, %41 : vector<1x256xi32>
    %c0_i32_12 = arith.constant 0 : i32
    %c7_i32_13 = arith.constant 7 : i32
    %43 = vector.broadcast %c0_i32_12 : i32 to vector<1x256xi32>
    %44 = arith.maxsi %43, %42 : vector<1x256xi32>
    %45 = vector.broadcast %c7_i32_13 : i32 to vector<1x256xi32>
    %46 = arith.minsi %45, %44 : vector<1x256xi32>
    %47 = tpu.iota {dimensions = array<i32: 0>} : vector<8x1xi32>
    %48 = vector.broadcast %47 : vector<8x1xi32> to vector<8x256xi32>
    %49 = vector.broadcast %20 : vector<1x256xi32> to vector<8x256xi32>
    %50 = arith.cmpi eq, %48, %49 : vector<8x256xi32>
    %cst_14 = arith.constant 0.000000e+00 : f32
    %51 = vector.shape_cast %11 : vector<1x256xf32> to vector<1x256xf32>
    %52 = vector.broadcast %51 : vector<1x256xf32> to vector<8x256xf32>
    %53 = vector.broadcast %cst_14 : f32 to vector<8x256xf32>
    %54 = arith.select %50, %52, %53 : vector<8x256xi1>, vector<8x256xf32>
    %55 = vector.broadcast %47 : vector<8x1xi32> to vector<8x256xi32>
    %56 = vector.broadcast %26 : vector<1x256xi32> to vector<8x256xi32>
    %57 = arith.cmpi eq, %55, %56 : vector<8x256xi32>
    %cst_15 = arith.constant 0.000000e+00 : f32
    %58 = vector.shape_cast %14 : vector<1x256xf32> to vector<1x256xf32>
    %59 = vector.broadcast %58 : vector<1x256xf32> to vector<8x256xf32>
    %60 = vector.broadcast %cst_15 : f32 to vector<8x256xf32>
    %61 = arith.select %57, %59, %60 : vector<8x256xi1>, vector<8x256xf32>
    %62 = arith.addf %54, %61 : vector<8x256xf32>
    %63 = vector.broadcast %47 : vector<8x1xi32> to vector<8x256xi32>
    %64 = vector.broadcast %30 : vector<1x256xi32> to vector<8x256xi32>
    %65 = arith.cmpi eq, %63, %64 : vector<8x256xi32>
    %cst_16 = arith.constant 0.000000e+00 : f32
    %66 = vector.shape_cast %12 : vector<1x256xf32> to vector<1x256xf32>
    %67 = vector.broadcast %66 : vector<1x256xf32> to vector<8x256xf32>
    %68 = vector.broadcast %cst_16 : f32 to vector<8x256xf32>
    %69 = arith.select %65, %67, %68 : vector<8x256xi1>, vector<8x256xf32>
    %70 = vector.broadcast %47 : vector<8x1xi32> to vector<8x256xi32>
    %71 = vector.broadcast %36 : vector<1x256xi32> to vector<8x256xi32>
    %72 = arith.cmpi eq, %70, %71 : vector<8x256xi32>
    %cst_17 = arith.constant 0.000000e+00 : f32
    %73 = vector.shape_cast %15 : vector<1x256xf32> to vector<1x256xf32>
    %74 = vector.broadcast %73 : vector<1x256xf32> to vector<8x256xf32>
    %75 = vector.broadcast %cst_17 : f32 to vector<8x256xf32>
    %76 = arith.select %72, %74, %75 : vector<8x256xi1>, vector<8x256xf32>
    %77 = arith.addf %69, %76 : vector<8x256xf32>
    %78 = vector.broadcast %47 : vector<8x1xi32> to vector<8x256xi32>
    %79 = vector.broadcast %40 : vector<1x256xi32> to vector<8x256xi32>
    %80 = arith.cmpi eq, %78, %79 : vector<8x256xi32>
    %cst_18 = arith.constant 0.000000e+00 : f32
    %81 = vector.shape_cast %13 : vector<1x256xf32> to vector<1x256xf32>
    %82 = vector.broadcast %81 : vector<1x256xf32> to vector<8x256xf32>
    %83 = vector.broadcast %cst_18 : f32 to vector<8x256xf32>
    %84 = arith.select %80, %82, %83 : vector<8x256xi1>, vector<8x256xf32>
    %85 = vector.broadcast %47 : vector<8x1xi32> to vector<8x256xi32>
    %86 = vector.broadcast %46 : vector<1x256xi32> to vector<8x256xi32>
    %87 = arith.cmpi eq, %85, %86 : vector<8x256xi32>
    %cst_19 = arith.constant 0.000000e+00 : f32
    %88 = vector.shape_cast %16 : vector<1x256xf32> to vector<1x256xf32>
    %89 = vector.broadcast %88 : vector<1x256xf32> to vector<8x256xf32>
    %90 = vector.broadcast %cst_19 : f32 to vector<8x256xf32>
    %91 = arith.select %87, %89, %90 : vector<8x256xi1>, vector<8x256xf32>
    %92 = arith.addf %84, %91 : vector<8x256xf32>
    %93 = vector.shape_cast %62 : vector<8x256xf32> to vector<8x1x256xf32>
    %94 = vector.shape_cast %77 : vector<8x256xf32> to vector<1x8x256xf32>
    %95 = vector.broadcast %93 : vector<8x1x256xf32> to vector<8x8x256xf32>
    %96 = vector.broadcast %94 : vector<1x8x256xf32> to vector<8x8x256xf32>
    %97 = arith.mulf %95, %96 : vector<8x8x256xf32>
    %98 = vector.shape_cast %97 : vector<8x8x256xf32> to vector<64x256xf32>
    %c0_20 = arith.constant 0 : index
    %c0_21 = arith.constant 0 : index
    %99 = vector.load %arg2[%c0_20, %c0_21] : memref<128x64xf32, #tpu.memory_space<vmem>>, vector<128x64xf32>
    %cst_22 = arith.constant dense<0.000000e+00> : vector<128x256xf32>
    %100 = tpu.matmul %99, %98, %cst_22 {dimension_numbers = #tpu.dot_dimension_numbers<[1], [0], [0], [1], [0, 0, 1, 1], [], []>} : vector<128x64xf32>, vector<64x256xf32>, vector<128x256xf32> -> vector<128x256xf32>
    %cst_23 = arith.constant 0.000000e+00 : f32
    %101 = vector.broadcast %cst_23 : f32 to vector<16x256xf32>
    %102 = vector.extract_strided_slice %100 {offsets = [0, 0], sizes = [16, 256], strides = [1, 1]} : vector<128x256xf32> to vector<16x256xf32>
    %103 = vector.extract_strided_slice %92 {offsets = [0, 0], sizes = [1, 256], strides = [1, 1]} : vector<8x256xf32> to vector<1x256xf32>
    %104 = vector.broadcast %103 : vector<1x256xf32> to vector<16x256xf32>
    %105 = arith.mulf %102, %104 : vector<16x256xf32>
    %106 = arith.addf %101, %105 : vector<16x256xf32>
    %107 = vector.extract_strided_slice %100 {offsets = [16, 0], sizes = [16, 256], strides = [1, 1]} : vector<128x256xf32> to vector<16x256xf32>
    %108 = vector.extract_strided_slice %92 {offsets = [1, 0], sizes = [1, 256], strides = [1, 1]} : vector<8x256xf32> to vector<1x256xf32>
    %109 = vector.broadcast %108 : vector<1x256xf32> to vector<16x256xf32>
    %110 = arith.mulf %107, %109 : vector<16x256xf32>
    %111 = arith.addf %106, %110 : vector<16x256xf32>
    %112 = vector.extract_strided_slice %100 {offsets = [32, 0], sizes = [16, 256], strides = [1, 1]} : vector<128x256xf32> to vector<16x256xf32>
    %113 = vector.extract_strided_slice %92 {offsets = [2, 0], sizes = [1, 256], strides = [1, 1]} : vector<8x256xf32> to vector<1x256xf32>
    %114 = vector.broadcast %113 : vector<1x256xf32> to vector<16x256xf32>
    %115 = arith.mulf %112, %114 : vector<16x256xf32>
    %116 = arith.addf %111, %115 : vector<16x256xf32>
    %117 = vector.extract_strided_slice %100 {offsets = [48, 0], sizes = [16, 256], strides = [1, 1]} : vector<128x256xf32> to vector<16x256xf32>
    %118 = vector.extract_strided_slice %92 {offsets = [3, 0], sizes = [1, 256], strides = [1, 1]} : vector<8x256xf32> to vector<1x256xf32>
    %119 = vector.broadcast %118 : vector<1x256xf32> to vector<16x256xf32>
    %120 = arith.mulf %117, %119 : vector<16x256xf32>
    %121 = arith.addf %116, %120 : vector<16x256xf32>
    %122 = vector.extract_strided_slice %100 {offsets = [64, 0], sizes = [16, 256], strides = [1, 1]} : vector<128x256xf32> to vector<16x256xf32>
    %123 = vector.extract_strided_slice %92 {offsets = [4, 0], sizes = [1, 256], strides = [1, 1]} : vector<8x256xf32> to vector<1x256xf32>
    %124 = vector.broadcast %123 : vector<1x256xf32> to vector<16x256xf32>
    %125 = arith.mulf %122, %124 : vector<16x256xf32>
    %126 = arith.addf %121, %125 : vector<16x256xf32>
    %127 = vector.extract_strided_slice %100 {offsets = [80, 0], sizes = [16, 256], strides = [1, 1]} : vector<128x256xf32> to vector<16x256xf32>
    %128 = vector.extract_strided_slice %92 {offsets = [5, 0], sizes = [1, 256], strides = [1, 1]} : vector<8x256xf32> to vector<1x256xf32>
    %129 = vector.broadcast %128 : vector<1x256xf32> to vector<16x256xf32>
    %130 = arith.mulf %127, %129 : vector<16x256xf32>
    %131 = arith.addf %126, %130 : vector<16x256xf32>
    %132 = vector.extract_strided_slice %100 {offsets = [96, 0], sizes = [16, 256], strides = [1, 1]} : vector<128x256xf32> to vector<16x256xf32>
    %133 = vector.extract_strided_slice %92 {offsets = [6, 0], sizes = [1, 256], strides = [1, 1]} : vector<8x256xf32> to vector<1x256xf32>
    %134 = vector.broadcast %133 : vector<1x256xf32> to vector<16x256xf32>
    %135 = arith.mulf %132, %134 : vector<16x256xf32>
    %136 = arith.addf %131, %135 : vector<16x256xf32>
    %137 = vector.extract_strided_slice %100 {offsets = [112, 0], sizes = [16, 256], strides = [1, 1]} : vector<128x256xf32> to vector<16x256xf32>
    %138 = vector.extract_strided_slice %92 {offsets = [7, 0], sizes = [1, 256], strides = [1, 1]} : vector<8x256xf32> to vector<1x256xf32>
    %139 = vector.broadcast %138 : vector<1x256xf32> to vector<16x256xf32>
    %140 = arith.mulf %137, %139 : vector<16x256xf32>
    %141 = arith.addf %136, %140 : vector<16x256xf32>
    %c0_24 = arith.constant 0 : index
    %c0_25 = arith.constant 0 : index
    %142 = vector.load %arg3[%c0_24, %c0_25] : memref<16x256xf32, #tpu.memory_space<vmem>>, vector<16x256xf32>
    tpu.vector_store %arg3[%c0_24, %c0_25], %141 {strides = array<i32>} : memref<16x256xf32, #tpu.memory_space<vmem>>, vector<16x256xf32>,
    return
  }
  func.func @transform_0(%arg0: i32) -> (i32, i32) {
    %c0_i32 = arith.constant 0 : i32
    %c0_i32_0 = arith.constant 0 : i32
    return %c0_i32, %arg0 : i32, i32
  }
  func.func @transform_1(%arg0: i32) -> (i32, i32) {
    %c0_i32 = arith.constant 0 : i32
    %c0_i32_0 = arith.constant 0 : i32
    %c0_i32_1 = arith.constant 0 : i32
    return %c0_i32, %c0_i32_0 : i32, i32
  }
  func.func @transform_2(%arg0: i32) -> (i32, i32) {
    %c0_i32 = arith.constant 0 : i32
    %c0_i32_0 = arith.constant 0 : i32
    return %c0_i32, %arg0 : i32, i32
  }
}

</mosaic_0001>

<llo_original>
// kernel: tpu_custom_call.1
$region0: #{tpu_custom_call.1}
  #allocation0 [shape = 'u32[]', space=smem, size = 0x4, offset = 0x4, fixed_abs, tag = 'smem constant byte address 0x4 - core index']
  #allocation1 [shape = 'u32[72,128]{1,0:T(1,128)}', space=vmem, size = 0x9000, scoped, tag = 'internal scratch']
  %s0 = inlined_call_operand.vmem [shape: f32[3,512], index: 0, kind: input, shape index: {}]
  %s1 = inlined_call_operand.vmem [shape: f32[128,64], index: 1, kind: input, shape index: {}]
  %s2 = inlined_call_operand.hbm [shape: f32[16,512], index: 2, kind: output, shape index: {}]
  %s3 = sld [smem:[#allocation0]]
  $region41: #{tpu_custom_call.1} parent=0
    _
  %s5 = ssub.s32 1, %s3
  %s6 = scalar_select 0, %s5, %s3
  $region1: #{tpu_custom_call.1} parent=0
    #allocation2 [shape = 'u8[32768]{0}', space=vmem, size = 0x8000, scoped, tag = 'output window, operand 0']
    #allocation3 [shape = 's32[2]{0}', space=sflag, size = 0x8, scoped, tag = 'scoped memory for tpu_custom_call.1']
    %7 = vsyncpa [#allocation3], 0
    %s8 = scalar_lea.sflag [#allocation3], 1
    %9 = vsyncpa %s8, 0
    loop: start=0, step=1, limit=4
    $region2: #{tpu_custom_call.1} parent=1 // loop_pre_header
      _
    $region3: #{tpu_custom_call.1} parent=1 // loop_header
      %s11 = sphi 0, %s15
      %p12 = scmp.ge.s32.totalorder %s11, 4
      %s21 = sphi 0, %s23
      %s24 = sphi 0, %s21
      %s25 = sphi 0, %s24
      %s41 = sphi 0, %s25
      %s45 = sphi 0, %s45
      %s47 = sphi 0, %s45
      %s48 = sphi 0, %s47
      %s62 = sphi 0, %s48
      %s68 = sphi 0, %s70
      %s71 = sphi 0, %s68
      %s72 = sphi 0, %s71
      %s88 = sphi 0, %s72
    $region4: #{tpu_custom_call.1} parent=1 // loop_header_branch
      %14 = sbr.rel (%p12) target = $region8
    $region5: #{tpu_custom_call.1} parent=1 // loop_body
      %s16 = ssub.s32 %s11, 1
      %s17 = ssub.s32 %s11, 2
      %s18 = sadd.s32 %s11, 1
      %s19 = ssub.s32 %s11, %s18
      %p20 = scmp.eq.s32.totalorder %s19, 0
      %s22 = sadd.s32 %s21, 1
      %s23 = scalar_select %p20, %s21, %s22
      %p26 = pneg %p20
      %p27 = scmp.eq.s32.totalorder %s11, 1
      %p28 = por %p26, %p27
      %p29 = scmp.ne.s32.totalorder %s21, %s24
      %p30 = scmp.eq.s32.totalorder %s11, 0
      %p31 = por %p29, %p30
      %p32 = scmp.ne.s32.totalorder %s21, %s24
      %p33 = scmp.eq.s32.totalorder %s16, 1
      %p34 = por %p32, %p33
      %p35 = scmp.ne.s32.totalorder %s24, %s25
      %p36 = scmp.eq.s32.totalorder %s16, 0
      %p37 = por %p35, %p36
      %p38 = scmp.ne.s32.totalorder %s24, %s25
      %p39 = scmp.eq.s32.totalorder %s17, 1
      %p40 = por %p38, %p39
      %p42 = scmp.ne.s32.totalorder %s25, %s41
      %p43 = scmp.eq.s32.totalorder %s17, 0
      %p44 = por %p42, %p43
      %s46 = sadd.s32 %s45, 1
      %p49 = scmp.eq.s32.totalorder %s11, 1
      %p50 = scmp.ne.s32.totalorder %s45, %s47
      %p51 = scmp.eq.s32.totalorder %s11, 0
      %p52 = por %p50, %p51
      %p53 = scmp.ne.s32.totalorder %s45, %s47
      %p54 = scmp.eq.s32.totalorder %s16, 1
      %p55 = por %p53, %p54
      %p56 = scmp.ne.s32.totalorder %s47, %s48
      %p57 = scmp.eq.s32.totalorder %s16, 0
      %p58 = por %p56, %p57
      %p59 = scmp.ne.s32.totalorder %s47, %s48
      %p60 = scmp.eq.s32.totalorder %s17, 1
      %p61 = por %p59, %p60
      %p63 = scmp.ne.s32.totalorder %s48, %s62
      %p64 = scmp.eq.s32.totalorder %s17, 0
      %p65 = por %p63, %p64
      %s66 = ssub.s32 %s11, %s18
      %p67 = scmp.eq.s32.totalorder %s66, 0
      %s69 = sadd.s32 %s68, 1
      %s70 = scalar_select %p67, %s68, %s69
      %p73 = pneg %p67
      %p74 = scmp.eq.s32.totalorder %s11, 1
      %p75 = por %p73, %p74
      %p76 = scmp.ne.s32.totalorder %s68, %s71
      %p77 = scmp.eq.s32.totalorder %s11, 0
      %p78 = por %p76, %p77
      %p79 = scmp.ne.s32.totalorder %s68, %s71
      %p80 = scmp.eq.s32.totalorder %s16, 1
      %p81 = por %p79, %p80
      %p82 = scmp.ne.s32.totalorder %s71, %s72
      %p83 = scmp.eq.s32.totalorder %s16, 0
      %p84 = por %p82, %p83
      %p85 = scmp.ne.s32.totalorder %s71, %s72
      %p86 = scmp.eq.s32.totalorder %s17, 1
      %p87 = por %p85, %p86
      %p89 = scmp.ne.s32.totalorder %s72, %s88
      %p90 = scmp.eq.s32.totalorder %s17, 0
      %p91 = por %p89, %p90
      %p92 = scmp.le.s32.totalorder 1, %s11
      %p93 = scmp.lt.s32.totalorder %s11, 3
      %p94 = pnand %p92, %p93
      %p95 = pneg %p94
      // Predicated region
      $region9: #{tpu_custom_call.1} parent=5 // pred_check
        _
      $region10: #{tpu_custom_call.1} parent=5 // pred_check_branch
        %97 = sbr.rel (%p94) target = $region12
      $region11: #{tpu_custom_call.1} parent=5 // pred_region
        %s98 = ssub.s32 %s11, 1
        // Predicated region
        $region13: #{tpu_custom_call.1} parent=11 // pred_check
          %p99 = pneg %p58
        $region14: #{tpu_custom_call.1} parent=11 // pred_check_branch
          %101 = sbr.rel (%p99) target = $region16
        $region15: #{tpu_custom_call.1} parent=11 // pred_region
          _
        $region16: #{tpu_custom_call.1} parent=11 // pred_fallthru
          _
      $region12: #{tpu_custom_call.1} parent=5 // pred_fallthru
        _
      %p102 = scmp.lt.s32.totalorder %s11, 2
      // Predicated region
      $region17: #{tpu_custom_call.1} parent=5 // pred_check
        %p103 = pneg %p102
      $region18: #{tpu_custom_call.1} parent=5 // pred_check_branch
        %105 = sbr.rel (%p103) target = $region20
      $region19: #{tpu_custom_call.1} parent=5 // pred_region
        // Predicated region
        $region21: #{tpu_custom_call.1} parent=19 // pred_check
          %p106 = pneg %p31
        $region22: #{tpu_custom_call.1} parent=19 // pred_check_branch
          %108 = sbr.rel (%p106) target = $region24
        $region23: #{tpu_custom_call.1} parent=19 // pred_region
          %s109 = smul.u32 2, %s11
          %p110 = scmp.lt.s32.totalorder %s109, 3
          %s111 = scalar_select %p110, %s109, 3
          %s112 = smul.addr %s111, 4
          %s113 = scalar_lea.vmem %s0, %s112
          %s114 = smul.u32 2, %s11
        $region24: #{tpu_custom_call.1} parent=19 // pred_fallthru
          _
      $region20: #{tpu_custom_call.1} parent=5 // pred_fallthru
        _
      %p115 = scmp.le.s32.totalorder 1, %s11
      %p116 = scmp.lt.s32.totalorder %s11, 3
      %p117 = pnand %p115, %p116
      %p118 = pneg %p117
      // Predicated region
      $region25: #{tpu_custom_call.1} parent=5 // pred_check
        _
      $region26: #{tpu_custom_call.1} parent=5 // pred_check_branch
        %120 = sbr.rel (%p117) target = $region28
      $region27: #{tpu_custom_call.1} parent=5 // pred_region
        %s121 = ssub.s32 %s11, 1
        %s122 = smul.u32 2, %s16
        %p123 = scmp.lt.s32.totalorder %s122, 3
        %s124 = scalar_select %p123, %s122, 3
        %s125 = smul.addr %s124, 4
        %s126 = scalar_lea.vmem %s0, %s125
        %p127 = pneg %p37
        %p128 = pneg %p34
        %p129 = pneg %p58
        %p130 = pneg %p55
        %p131 = pneg %p84
        %p132 = pneg %p81
        %s133 = sand.u32 %s71, 1
        %s134 = scalar_lea.sflag [#allocation3], %s133
        %s135 = sand.u32 %s71, 1
        %s136 = smul.addr %s135, 32
        %s137 = scalar_lea.vmem [#allocation2], %s136
        %s138 = smul.u32 2, %s16
        %p139 = scmp.lt.s32.totalorder %s138, 3
        %s140 = scalar_select %p139, %s138, 3
        %s141 = smul.addr %s140, 4
        %s142 = scalar_lea.vmem %s0, %s141
        %s143 = smul.u32 2, %s16
        %s144 = smul.u32 2, %s16
        %v145 = vld [vmem:[%s142] sm:$0x77]
        %v146 = vmul.f32 %v145, 6.0
        %v147 = vfloor.f32 %v146
        %v148 = vsub.f32 %v146, %v147
        %v149 = vsub.f32 1.0, %v148
        %v150 = vcvt.f32.s32.to.zero.pseudo %v147
        %vm151 = vcmp.gt.s32.totalorder %v150, 0
        %v152 = vsel %vm151, %v150, 0
        %vm153 = vcmp.lt.s32.totalorder %v152, 7
        %v154 = vsel %vm153, %v152, 7
        %v155 = vadd.s32 %v150, 1
        %vm156 = vcmp.gt.s32.totalorder %v155, 0
        %v157 = vsel %vm156, %v155, 0
        %vm158 = vcmp.lt.s32.totalorder %v157, 7
        %v159 = vsel %vm158, %v157, 7
        %v160 = vlaneseq
        %v161 = vshrl.u32 %v160, 7
        %v162 = vperm.slane %v154, 0
        %v163 = vperm.slane %v154, 4
        %v164 = vperm.slane %v162, 0
        %v165 = vperm.slane %v163, 0
        %vm166 = vcmp.eq.s32.totalorder %v161, %v164
        %vm167 = vcmp.eq.s32.totalorder %v161, %v165
        %v169 = vperm.slane %v149, 0
        %v170 = vperm.slane %v149, 4
        %v173 = vperm.slane %v169, 0
        %v174 = vperm.slane %v170, 0
        %v175 = vsel %vm166, %v173, 0.0
        %v176 = vsel %vm167, %v174, 0.0
        %v177 = vperm.slane %v159, 0
        %v178 = vperm.slane %v159, 4
        %v179 = vperm.slane %v177, 0
        %v180 = vperm.slane %v178, 0
        %vm181 = vcmp.eq.s32.totalorder %v161, %v179
        %vm182 = vcmp.eq.s32.totalorder %v161, %v180
        %v184 = vperm.slane %v148, 0
        %v185 = vperm.slane %v148, 4
        %v188 = vperm.slane %v184, 0
        %v189 = vperm.slane %v185, 0
        %v190 = vsel %vm181, %v188, 0.0
        %v191 = vsel %vm182, %v189, 0.0
        %v192 = vadd.f32 %v175, %v190
        %v193 = vadd.f32 %v176, %v191
        %v194 = vperm.slane %v154, 1
        %v195 = vperm.slane %v154, 5
        %v196 = vperm.slane %v194, 1
        %v197 = vperm.slane %v195, 1
        %vm198 = vcmp.eq.s32.totalorder %v161, %v196
        %vm199 = vcmp.eq.s32.totalorder %v161, %v197
        %v200 = vperm.slane %v149, 1
        %v201 = vperm.slane %v149, 5
        %v204 = vperm.slane %v200, 1
        %v205 = vperm.slane %v201, 1
        %v206 = vsel %vm198, %v204, 0.0
        %v207 = vsel %vm199, %v205, 0.0
        %v208 = vperm.slane %v159, 1
        %v209 = vperm.slane %v159, 5
        %v210 = vperm.slane %v208, 1
        %v211 = vperm.slane %v209, 1
        %vm212 = vcmp.eq.s32.totalorder %v161, %v210
        %vm213 = vcmp.eq.s32.totalorder %v161, %v211
        %v214 = vperm.slane %v148, 1
        %v215 = vperm.slane %v148, 5
        %v218 = vperm.slane %v214, 1
        %v219 = vperm.slane %v215, 1
        %v220 = vsel %vm212, %v218, 0.0
        %v221 = vsel %vm213, %v219, 0.0
        %v222 = vadd.f32 %v206, %v220
        %v223 = vadd.f32 %v207, %v221
        %v224 = vperm.slane %v154, 2
        %v225 = vperm.slane %v154, 6
        %v226 = vperm.slane %v224, 2
        %v227 = vperm.slane %v225, 2
        %vm228 = vcmp.eq.s32.totalorder %v161, %v226
        %vm229 = vcmp.eq.s32.totalorder %v161, %v227
        %v230 = vperm.slane %v149, 2
        %v231 = vperm.slane %v149, 6
        %v234 = vperm.slane %v230, 2
        %v235 = vperm.slane %v231, 2
        %v236 = vsel %vm228, %v234, 0.0
        %v237 = vsel %vm229, %v235, 0.0
        %v238 = vperm.slane %v159, 2
        %v239 = vperm.slane %v159, 6
        %v240 = vperm.slane %v238, 2
        %v241 = vperm.slane %v239, 2
        %vm242 = vcmp.eq.s32.totalorder %v161, %v240
        %vm243 = vcmp.eq.s32.totalorder %v161, %v241
        %v244 = vperm.slane %v148, 2
        %v245 = vperm.slane %v148, 6
        %v248 = vperm.slane %v244, 2
        %v249 = vperm.slane %v245, 2
        %v250 = vsel %vm242, %v248, 0.0
        %v251 = vsel %vm243, %v249, 0.0
        %v252 = vadd.f32 %v236, %v250
        %v253 = vadd.f32 %v237, %v251
        %v256 = vrot.slane %v193, 7
        %vm257 = vcmask 1040384
        %v258 = vsel %vm257, %v192, %v256
        %vm259 = vcmask 1041409
        %v260 = vsel %vm259, %v192, %v256
        %v261 = vrot.slane %v260, 1
        %vm262 = vcmask 1042434
        %v263 = vsel %vm262, %v192, %v256
        %v264 = vrot.slane %v263, 2
        %vm265 = vcmask 1043459
        %v266 = vsel %vm265, %v192, %v256
        %v267 = vrot.slane %v266, 3
        %vm268 = vcmask 1044484
        %v269 = vsel %vm268, %v192, %v256
        %v270 = vrot.slane %v269, 4
        %vm271 = vcmask 1045509
        %v272 = vsel %vm271, %v192, %v256
        %v273 = vrot.slane %v272, 5
        %vm274 = vcmask 1046534
        %v275 = vsel %vm274, %v192, %v256
        %v276 = vrot.slane %v275, 6
        %vm277 = vcmask 1046528
        %v278 = vsel %vm277, %v256, %v192
        %v279 = vrot.slane %v278, 7
        %v280 = vperm.slane %v258, 0
        %v281 = vperm.slane %v258, 1
        %v282 = vperm.slane %v261, 0
        %v283 = vperm.slane %v261, 1
        %v284 = vperm.slane %v264, 0
        %v285 = vperm.slane %v264, 1
        %v286 = vperm.slane %v267, 0
        %v287 = vperm.slane %v267, 1
        %v288 = vperm.slane %v270, 0
        %v289 = vperm.slane %v270, 1
        %v290 = vperm.slane %v273, 0
        %v291 = vperm.slane %v273, 1
        %v292 = vperm.slane %v276, 0
        %v293 = vperm.slane %v276, 1
        %v294 = vperm.slane %v279, 0
        %v295 = vperm.slane %v279, 1
        %v312 = vmul.f32 %v280, %v222
        %v313 = vmul.f32 %v281, %v223
        %v314 = vmul.f32 %v282, %v222
        %v315 = vmul.f32 %v283, %v223
        %v316 = vmul.f32 %v284, %v222
        %v317 = vmul.f32 %v285, %v223
        %v318 = vmul.f32 %v286, %v222
        %v319 = vmul.f32 %v287, %v223
        %v320 = vmul.f32 %v288, %v222
        %v321 = vmul.f32 %v289, %v223
        %v322 = vmul.f32 %v290, %v222
        %v323 = vmul.f32 %v291, %v223
        %v324 = vmul.f32 %v292, %v222
        %v325 = vmul.f32 %v293, %v223
        %v326 = vmul.f32 %v294, %v222
        %v327 = vmul.f32 %v295, %v223
        %v328 = vld [vmem:[%s1] sm:$0xff]
        %v329 = vld [vmem:[%s1 + $0x8] sm:$0xff]
        %v330 = vld [vmem:[%s1 + $0x10] sm:$0xff]
        %v331 = vld [vmem:[%s1 + $0x18] sm:$0xff]
        %v332 = vld [vmem:[%s1 + $0x20] sm:$0xff]
        %v333 = vld [vmem:[%s1 + $0x28] sm:$0xff]
        %v334 = vld [vmem:[%s1 + $0x30] sm:$0xff]
        %v335 = vld [vmem:[%s1 + $0x38] sm:$0xff]
        %v336 = vld [vmem:[%s1 + $0x40] sm:$0xff]
        %v337 = vld [vmem:[%s1 + $0x48] sm:$0xff]
        %v338 = vld [vmem:[%s1 + $0x50] sm:$0xff]
        %v339 = vld [vmem:[%s1 + $0x58] sm:$0xff]
        %v340 = vld [vmem:[%s1 + $0x60] sm:$0xff]
        %v341 = vld [vmem:[%s1 + $0x68] sm:$0xff]
        %v342 = vld [vmem:[%s1 + $0x70] sm:$0xff]
        %v343 = vld [vmem:[%s1 + $0x78] sm:$0xff]
        %vm344 = vcmask 523264
        %v346 = vsel %vm344, %v328, 0
        %v349 = vsel %vm344, %v329, 0
        %v352 = vsel %vm344, %v330, 0
        %v355 = vsel %vm344, %v331, 0
        %v358 = vsel %vm344, %v332, 0
        %v361 = vsel %vm344, %v333, 0
        %v364 = vsel %vm344, %v334, 0
        %v367 = vsel %vm344, %v335, 0
        %v370 = vsel %vm344, %v336, 0
        %v373 = vsel %vm344, %v337, 0
        %v376 = vsel %vm344, %v338, 0
        %v379 = vsel %vm344, %v339, 0
        %v382 = vsel %vm344, %v340, 0
        %v385 = vsel %vm344, %v341, 0
        %v388 = vsel %vm344, %v342, 0
        %v391 = vsel %vm344, %v343, 0
        %393 = vmatpush.msra.mxu0 0.0
        %394 = vmatpush.msra.mxu0 0.0
        %395 = vmatpush.msra.mxu0 0.0
        %396 = vmatpush.msra.mxu0 0.0
        %397 = vmatpush.msra.mxu0 0.0
        %398 = vmatpush.msra.mxu0 0.0
        %399 = vmatpush.msra.mxu0 0.0
        %400 = vmatpush.msra.mxu0 0.0
        %401 = vmatpush.msra.mxu0 %v326
        %402 = vmatpush.msra.mxu0 %v324
        %403 = vmatpush.msra.mxu0 %v322
        %404 = vmatpush.msra.mxu0 %v320
        %405 = vmatpush.msra.mxu0 %v318
        %406 = vmatpush.msra.mxu0 %v316
        %407 = vmatpush.msra.mxu0 %v314
        %408 = vmatpush.msra.mxu0 %v312
        %409 = vmatmul.f32.gmra.mxu0 %v346
        %v410 = vpop.f32.mrf.mxu0
        %v411 = vadd.f32 0.0, %v410
        %412 = vmatmul.f32.gmra.mxu0 %v349
        %v413 = vpop.f32.mrf.mxu0
        %v414 = vadd.f32 0.0, %v413
        %415 = vmatmul.f32.gmra.mxu0 %v352
        %v416 = vpop.f32.mrf.mxu0
        %v417 = vadd.f32 0.0, %v416
        %418 = vmatmul.f32.gmra.mxu0 %v355
        %v419 = vpop.f32.mrf.mxu0
        %v420 = vadd.f32 0.0, %v419
        %421 = vmatmul.f32.gmra.mxu0 %v358
        %v422 = vpop.f32.mrf.mxu0
        %v423 = vadd.f32 0.0, %v422
        %424 = vmatmul.f32.gmra.mxu0 %v361
        %v425 = vpop.f32.mrf.mxu0
        %v426 = vadd.f32 0.0, %v425
        %427 = vmatmul.f32.gmra.mxu0 %v364
        %v428 = vpop.f32.mrf.mxu0
        %v429 = vadd.f32 0.0, %v428
        %430 = vmatmul.f32.gmra.mxu0 %v367
        %v431 = vpop.f32.mrf.mxu0
        %v432 = vadd.f32 0.0, %v431
        %433 = vmatmul.f32.gmra.mxu0 %v370
        %v434 = vpop.f32.mrf.mxu0
        %v435 = vadd.f32 0.0, %v434
        %436 = vmatmul.f32.gmra.mxu0 %v373
        %v437 = vpop.f32.mrf.mxu0
        %v438 = vadd.f32 0.0, %v437
        %439 = vmatmul.f32.gmra.mxu0 %v376
        %v440 = vpop.f32.mrf.mxu0
        %v441 = vadd.f32 0.0, %v440
        %442 = vmatmul.f32.gmra.mxu0 %v379
        %v443 = vpop.f32.mrf.mxu0
        %v444 = vadd.f32 0.0, %v443
        %445 = vmatmul.f32.gmra.mxu0 %v382
        %v446 = vpop.f32.mrf.mxu0
        %v447 = vadd.f32 0.0, %v446
        %448 = vmatmul.f32.gmra.mxu0 %v385
        %v449 = vpop.f32.mrf.mxu0
        %v450 = vadd.f32 0.0, %v449
        %451 = vmatmul.f32.gmra.mxu0 %v388
        %v452 = vpop.f32.mrf.mxu0
        %v453 = vadd.f32 0.0, %v452
        %454 = vmatmul.f32.gmra.mxu0 %v391
        %v455 = vpop.f32.mrf.mxu0
        %v456 = vadd.f32 0.0, %v455
        %457 = vdwg.mxu0
        %458 = vmatpush.msra.mxu0 0.0
        %459 = vmatpush.msra.mxu0 0.0
        %460 = vmatpush.msra.mxu0 0.0
        %461 = vmatpush.msra.mxu0 0.0
        %462 = vmatpush.msra.mxu0 0.0
        %463 = vmatpush.msra.mxu0 0.0
        %464 = vmatpush.msra.mxu0 0.0
        %465 = vmatpush.msra.mxu0 0.0
        %466 = vmatpush.msra.mxu0 %v327
        %467 = vmatpush.msra.mxu0 %v325
        %468 = vmatpush.msra.mxu0 %v323
        %469 = vmatpush.msra.mxu0 %v321
        %470 = vmatpush.msra.mxu0 %v319
        %471 = vmatpush.msra.mxu0 %v317
        %472 = vmatpush.msra.mxu0 %v315
        %473 = vmatpush.msra.mxu0 %v313
        %474 = vmatmul.f32.gmra.mxu0 %v346
        %v475 = vpop.f32.mrf.mxu0
        %v476 = vadd.f32 0.0, %v475
        %477 = vmatmul.f32.gmra.mxu0 %v349
        %v478 = vpop.f32.mrf.mxu0
        %v479 = vadd.f32 0.0, %v478
        %480 = vmatmul.f32.gmra.mxu0 %v352
        %v481 = vpop.f32.mrf.mxu0
        %v482 = vadd.f32 0.0, %v481
        %483 = vmatmul.f32.gmra.mxu0 %v355
        %v484 = vpop.f32.mrf.mxu0
        %v485 = vadd.f32 0.0, %v484
        %486 = vmatmul.f32.gmra.mxu0 %v358
        %v487 = vpop.f32.mrf.mxu0
        %v488 = vadd.f32 0.0, %v487
        %489 = vmatmul.f32.gmra.mxu0 %v361
        %v490 = vpop.f32.mrf.mxu0
        %v491 = vadd.f32 0.0, %v490
        %492 = vmatmul.f32.gmra.mxu0 %v364
        %v493 = vpop.f32.mrf.mxu0
        %v494 = vadd.f32 0.0, %v493
        %495 = vmatmul.f32.gmra.mxu0 %v367
        %v496 = vpop.f32.mrf.mxu0
        %v497 = vadd.f32 0.0, %v496
        %498 = vmatmul.f32.gmra.mxu0 %v370
        %v499 = vpop.f32.mrf.mxu0
        %v500 = vadd.f32 0.0, %v499
        %501 = vmatmul.f32.gmra.mxu0 %v373
        %v502 = vpop.f32.mrf.mxu0
        %v503 = vadd.f32 0.0, %v502
        %504 = vmatmul.f32.gmra.mxu0 %v376
        %v505 = vpop.f32.mrf.mxu0
        %v506 = vadd.f32 0.0, %v505
        %507 = vmatmul.f32.gmra.mxu0 %v379
        %v508 = vpop.f32.mrf.mxu0
        %v509 = vadd.f32 0.0, %v508
        %510 = vmatmul.f32.gmra.mxu0 %v382
        %v511 = vpop.f32.mrf.mxu0
        %v512 = vadd.f32 0.0, %v511
        %513 = vmatmul.f32.gmra.mxu0 %v385
        %v514 = vpop.f32.mrf.mxu0
        %v515 = vadd.f32 0.0, %v514
        %516 = vmatmul.f32.gmra.mxu0 %v388
        %v517 = vpop.f32.mrf.mxu0
        %v518 = vadd.f32 0.0, %v517
        %519 = vmatmul.f32.gmra.mxu0 %v391
        %v520 = vpop.f32.mrf.mxu0
        %v521 = vadd.f32 0.0, %v520
        %522 = vdwg.mxu0
        %v523 = vperm.slane %v252, 0
        %v524 = vperm.slane %v253, 0
        %v525 = vmul.f32 %v411, %v523
        %v526 = vmul.f32 %v476, %v524
        %v527 = vmul.f32 %v414, %v523
        %v528 = vmul.f32 %v479, %v524
        %v529 = vadd.f32 %v525, 0.0
        %v530 = vadd.f32 %v526, 0.0
        %v531 = vadd.f32 %v527, 0.0
        %v532 = vadd.f32 %v528, 0.0
        %v533 = vperm.slane %v252, 1
        %v534 = vperm.slane %v253, 1
        %v535 = vmul.f32 %v417, %v533
        %v536 = vmul.f32 %v482, %v534
        %v537 = vmul.f32 %v420, %v533
        %v538 = vmul.f32 %v485, %v534
        %v539 = vadd.f32 %v529, %v535
        %v540 = vadd.f32 %v530, %v536
        %v541 = vadd.f32 %v531, %v537
        %v542 = vadd.f32 %v532, %v538
        %v543 = vperm.slane %v252, 2
        %v544 = vperm.slane %v253, 2
        %v545 = vmul.f32 %v423, %v543
        %v546 = vmul.f32 %v488, %v544
        %v547 = vmul.f32 %v426, %v543
        %v548 = vmul.f32 %v491, %v544
        %v549 = vadd.f32 %v539, %v545
        %v550 = vadd.f32 %v540, %v546
        %v551 = vadd.f32 %v541, %v547
        %v552 = vadd.f32 %v542, %v548
        %v553 = vperm.slane %v252, 3
        %v554 = vperm.slane %v253, 3
        %v555 = vmul.f32 %v429, %v553
        %v556 = vmul.f32 %v494, %v554
        %v557 = vmul.f32 %v432, %v553
        %v558 = vmul.f32 %v497, %v554
        %v559 = vadd.f32 %v549, %v555
        %v560 = vadd.f32 %v550, %v556
        %v561 = vadd.f32 %v551, %v557
        %v562 = vadd.f32 %v552, %v558
        %v563 = vperm.slane %v252, 4
        %v564 = vperm.slane %v253, 4
        %v565 = vmul.f32 %v435, %v563
        %v566 = vmul.f32 %v500, %v564
        %v567 = vmul.f32 %v438, %v563
        %v568 = vmul.f32 %v503, %v564
        %v569 = vadd.f32 %v559, %v565
        %v570 = vadd.f32 %v560, %v566
        %v571 = vadd.f32 %v561, %v567
        %v572 = vadd.f32 %v562, %v568
        %v573 = vperm.slane %v252, 5
        %v574 = vperm.slane %v253, 5
        %v575 = vmul.f32 %v441, %v573
        %v576 = vmul.f32 %v506, %v574
        %v577 = vmul.f32 %v444, %v573
        %v578 = vmul.f32 %v509, %v574
        %v579 = vadd.f32 %v569, %v575
        %v580 = vadd.f32 %v570, %v576
        %v581 = vadd.f32 %v571, %v577
        %v582 = vadd.f32 %v572, %v578
        %v583 = vperm.slane %v252, 6
        %v584 = vperm.slane %v253, 6
        %v585 = vmul.f32 %v447, %v583
        %v586 = vmul.f32 %v512, %v584
        %v587 = vmul.f32 %v450, %v583
        %v588 = vmul.f32 %v515, %v584
        %v589 = vadd.f32 %v579, %v585
        %v590 = vadd.f32 %v580, %v586
        %v591 = vadd.f32 %v581, %v587
        %v592 = vadd.f32 %v582, %v588
        %v593 = vperm.slane %v252, 7
        %v594 = vperm.slane %v253, 7
        %v595 = vmul.f32 %v453, %v593
        %v596 = vmul.f32 %v518, %v594
        %v597 = vmul.f32 %v456, %v593
        %v598 = vmul.f32 %v521, %v594
        %v599 = vadd.f32 %v589, %v595
        %v600 = vadd.f32 %v590, %v596
        %v601 = vadd.f32 %v591, %v597
        %v602 = vadd.f32 %v592, %v598
        %603 = vst [vmem:[%s137] sm:$0xff] %v599
        %604 = vst [vmem:[%s137 + $0x8] sm:$0xff] %v600
        %605 = vst [vmem:[%s137 + $0x10] sm:$0xff] %v601
        %606 = vst [vmem:[%s137 + $0x18] sm:$0xff] %v602
        %s607 = sand.u32 %s71, 1
        %s608 = scalar_lea.sflag [#allocation3], %s607
        %s609 = sand.u32 %s71, 1
        %s610 = smul.addr %s609, 32
        %s611 = scalar_lea.vmem [#allocation2], %s610
        // Predicated region
        $region29: #{tpu_custom_call.1} parent=27 // pred_check
          %p612 = pneg %p81
        $region30: #{tpu_custom_call.1} parent=27 // pred_check_branch
          %614 = sbr.rel (%p612) target = $region32
        $region31: #{tpu_custom_call.1} parent=27 // pred_region
          %s615 = smul.u32 2, %s16
          %617 = vsyncadd %s608, 0
          %s618 = smul.addr %s615, 8
          %s619 = scalar_lea.hbm %s2, %s618
          %s620 = sshll.u32 %s611, 4
          %s621 = int_to_ptr.vmem [resolvable:$true] %s620
          %s622 = sshll.u32 %s619, 4
          %s623 = int_to_ptr.hbm [resolvable:$true] %s622
          %628 = dma.vmem_to_hbm [thread:$0]  %s621, 512, %s623, %s608, 256, 512, 16
        $region32: #{tpu_custom_call.1} parent=27 // pred_fallthru
          _
      $region28: #{tpu_custom_call.1} parent=5 // pred_fallthru
        _
      %p629 = scmp.le.s32.totalorder 2, %s11
      // Predicated region
      $region33: #{tpu_custom_call.1} parent=5 // pred_check
        %p630 = pneg %p629
      $region34: #{tpu_custom_call.1} parent=5 // pred_check_branch
        %632 = sbr.rel (%p630) target = $region36
      $region35: #{tpu_custom_call.1} parent=5 // pred_region
        %s633 = ssub.s32 %s11, 2
        // Predicated region
        $region37: #{tpu_custom_call.1} parent=35 // pred_check
          %p634 = pneg %p87
        $region38: #{tpu_custom_call.1} parent=35 // pred_check_branch
          %636 = sbr.rel (%p634) target = $region40
        $region39: #{tpu_custom_call.1} parent=35 // pred_region
          %s637 = sand.u32 %s72, 1
          %s638 = scalar_lea.sflag [#allocation3], %s637
          %s639 = sand.u32 %s72, 1
          %s640 = smul.addr %s639, 32
          %s641 = scalar_lea.vmem [#allocation2], %s640
          %643 = dma.done %s638, 512
        $region40: #{tpu_custom_call.1} parent=35 // pred_fallthru
          _
      $region36: #{tpu_custom_call.1} parent=5 // pred_fallthru
        _
    $region6: #{tpu_custom_call.1} parent=1 // loop_footer
      %s15 = sadd.s32 1, %s11
    $region7: #{tpu_custom_call.1} parent=1 // loop_footer_branch
      %10 = sbr.rel target = $region3
    $region8: #{tpu_custom_call.1} parent=1 // loop_exit
      _
    %644 = vsyncpa [#allocation3], 1
    %s645 = scalar_lea.sflag [#allocation3], 1
    %646 = vsyncpa %s645, 1

</llo_original>
